<compile_context>
chip_gen: v7x
topology: tpu7x:2x2x1
jax: 0.10.0
libtpu: 0.0.40
codegen_flags: <defaults>
</compile_context>

<pallas_src>
import numpy as np

import jax
import jax.numpy as jnp
from jax.experimental import pallas as pl
from jax.experimental.pallas import tpu as pltpu

_LANE = 128
_OUT_LANES = 128          # lane-dense output block width (unmasked vst)
_MAX_TILE_N = 65536       # lanes per point-axis tile -> 2 MiB f32 input blocks
_MIN_SPLIT_LANES = 16384  # only split the tile axis if each half keeps >=512 KiB blocks


def _cdiv(a, b):
    return -(-a // b)


def _round_up(x, m):
    return _cdiv(x, m) * m


# ----------------------------- Pallas kernel ------------------------------- #

def _moments_kernel(packed_ref, out_ref, acc_ref):
    """Accumulate raw first/second moments of one structure tile.

    packed_ref block: (1, 8, TILE_N) f32; rows 0-2 centered pred xyz,
                      rows 3-5 centered coords xyz, row 6 ones on valid points,
                      row 7 zero.  Padded lanes are all-zero.
    acc_ref scratch : (8, 128) f32, resident across the tile axis.
        lane 0   : sum(blk)         -> S_p | S_c | N
        lane 1   : sum(blk * blk)   -> sum p_d^2 | sum c_d^2 | N
        lane 2+j : sum(blk * c_j)   -> M[:, j] in rows 0-2
    out_ref block (1, 1, 8, 128) is written once, on the last tile.
    """
    t = pl.program_id(2)

    @pl.when(t == 0)
    def _():
        acc_ref[...] = jnp.zeros_like(acc_ref)

    blk = packed_ref[0]                                        # (8, TILE_N) f32
    crd0 = blk[3:4, :]                                         # (1, TILE_N)
    crd1 = blk[4:5, :]
    crd2 = blk[5:6, :]

    # VPU multiplies + XLU lane reductions; these tiny 3-wide contractions
    # never touch the MXU (an 8x8xK Gram there is weight-reload bound).
    s_col = jnp.sum(blk, axis=1, keepdims=True)                # (8, 1)
    sq_col = jnp.sum(blk * blk, axis=1, keepdims=True)         # (8, 1)
    m0_col = jnp.sum(blk * crd0, axis=1, keepdims=True)        # (8, 1)
    m1_col = jnp.sum(blk * crd1, axis=1, keepdims=True)        # (8, 1)
    m2_col = jnp.sum(blk * crd2, axis=1, keepdims=True)        # (8, 1)

    # Scatter the five (8,1) columns into one (8,128) vreg with one-hot lane
    # masks (a dozen single-vreg VPU ops per *tile*, negligible next to the
    # per-vreg reduction work above), then a single unmasked accumulate.
    lane = jax.lax.broadcasted_iota(jnp.int32, (8, _OUT_LANES), 1)
    onehot = lambda k: (lane == k).astype(jnp.float32)
    contrib = (s_col * onehot(0) + sq_col * onehot(1) + m0_col * onehot(2)
               + m1_col * onehot(3) + m2_col * onehot(4))
    acc_ref[...] += contrib

    @pl.when(t == pl.num_programs(2) - 1)
    def _():
        out_ref[0, 0] = acc_ref[...]


# --------------------------- pallas_call wrapper ---------------------------- #

def _kabsch_moments(packed, tile_n, n_split, tiles_per_split):
    """packed: (B, 8, N_pad) f32 -> raw moments (B, n_split, 8, 128) f32."""
    b, rows, n_pad = packed.shape
    grid = (b, n_split, tiles_per_split)
    flops = int(9 * packed.size)                     # mul + add reduction work
    bytes_accessed = int(packed.size * 4 + b * n_split * rows * _OUT_LANES * 4)
    return pl.pallas_call(
        _moments_kernel,
        grid=grid,
        in_specs=[pl.BlockSpec(
            (1, rows, tile_n),
            lambda i, j, t: (i, 0, j * tiles_per_split + t))],
        out_specs=pl.BlockSpec(
            (1, 1, rows, _OUT_LANES), lambda i, j, t: (i, j, 0, 0)),
        out_shape=jax.ShapeDtypeStruct((b, n_split, rows, _OUT_LANES),
                                       jnp.float32),
        scratch_shapes=[pltpu.VMEM((rows, _OUT_LANES), jnp.float32)],
        compiler_params=pltpu.CompilerParams(
            dimension_semantics=("parallel", "parallel", "arbitrary"),
            vmem_limit_bytes=32 * 1024 * 1024),
        cost_estimate=pl.CostEstimate(
            flops=flops, transcendentals=0, bytes_accessed=bytes_accessed),
    )(packed)


# ------------------------------ host packing -------------------------------- #

def _pack_structures(coords_pred_list, coords_list, max_tile_n, min_split_lanes):
    """Host-side NumPy packing: one slab, one H2D transfer.

    Coordinates are pre-centered with float64 host means so the raw-moment
    formulation does not cancel catastrophically in f32.
    Returns (packed (B,8,N_pad), centroids (B,2,3), tile_n, n_split, tiles_per_split).
    """
    b = len(coords_list)
    n_per = [int(np.shape(p)[0]) for p in coords_pred_list]
    n_max = max(max(n_per), 1)
    n_lane = _round_up(n_max, _LANE)

    # Split the tile axis in two for single-structure batches so both v7x
    # TensorCores get work, but only if each half keeps >=512 KiB blocks.
    n_split = 2 if (b == 1 and n_lane >= 2 * min_split_lanes) else 1
    tiles_per_split = _cdiv(_cdiv(n_lane, n_split), max_tile_n)
    tile_n = _round_up(_cdiv(n_lane, n_split * tiles_per_split), _LANE)
    n_pad = tile_n * n_split * tiles_per_split

    packed = np.zeros((b, 8, n_pad), np.float32)
    centroids = np.zeros((b, 2, 3), np.float64)
    for i, (p, c) in enumerate(zip(coords_pred_list, coords_list)):
        p = np.asarray(p, np.float64)
        c = np.asarray(c, np.float64)
        n = p.shape[0]
        mu_p = p.mean(axis=0)
        mu_c = c.mean(axis=0)
        centroids[i, 0] = mu_p
        centroids[i, 1] = mu_c
        packed[i, 0:3, :n] = (p - mu_p).T
        packed[i, 3:6, :n] = (c - mu_c).T
        packed[i, 6, :n] = 1.0
    return (jnp.asarray(packed), jnp.asarray(centroids, dtype=jnp.float32),
            tile_n, n_split, tiles_per_split)


# ------------------------------- KabschRMSD ---------------------------------- #

def kabsch_rmsd(coords_pred, coords, return_all=False, mode="global",
                max_tile_n=_MAX_TILE_N, min_split_lanes=_MIN_SPLIT_LANES):
    """Mirrors KabschRMSD.forward; lists of [N_i, 3] arrays per argument."""
    b = len(coords)
    packed, centroids, tile_n, n_split, tps = _pack_structures(
        coords_pred, coords, max_tile_n, min_split_lanes)

    # Single batched Pallas pass over all coordinates (the only bulk HBM read).
    raw = _kabsch_moments(packed, tile_n, n_split, tps)        # (B, S, 8, 128)
    moments = jnp.sum(raw, axis=1)                             # (B, 8, 128)

    n = moments[:, 6, 0]                                       # (B,) point counts
    inv_n = 1.0 / n
    s_p = moments[:, 0:3, 0]                                   # (B,3) residual sums (~0)
    s_c = moments[:, 3:6, 0]
    pp = jnp.sum(moments[:, 0:3, 1], axis=1)                   # (B,) sum ||pred||^2
    pc = jnp.sum(moments[:, 3:6, 1], axis=1)                   # (B,) sum ||crd||^2
    m = moments[:, 0:3, 2:5]                                   # (B,3,3) sum p_i c_j

    # Exact centered covariance / scatters; the inputs were pre-centered on
    # host, so the corrections below are ~0 and there is no f32 cancellation.
    a = m - (s_p[:, :, None] * s_c[:, None, :]) * inv_n[:, None, None]
    ep = pp - jnp.sum(s_p * s_p, axis=1) * inv_n
    ec = pc - jnp.sum(s_c * s_c, axis=1) * inv_n

    # TODO(synk): batched 3x3 SVD / det have no Pallas primitive — plain JAX glue.
    u, s, vt = jnp.linalg.svd(a)
    # Matches torch.sign(det(A)), including the measure-zero det == 0 case.
    sign = jnp.sign(jnp.linalg.det(a))                         # (B,)

    # Closed-form optimal SSD: Ep + Ec - 2*(s0 + s1 + sign*s2), clamped at 0.
    trace_cs = s[:, 0] + s[:, 1] + sign * s[:, 2]
    ssd = jnp.maximum(ep + ec - 2.0 * trace_cs, 0.0)
    rmsd_global = jnp.sqrt(ssd * inv_n)                        # (B,)

    if mode == "global":
        if return_all:
            return [rmsd_global[i] for i in range(b)]
        return jnp.mean(rmsd_global)

    # Local (per-point) path: tiny, off the hot path — plain JAX on ragged inputs.
    ones = jnp.ones_like(sign)
    d = jnp.stack([ones, ones, sign], axis=-1)                 # (B, 3)
    rotation = jnp.einsum("bij,bj,bjk->bik", u, d, vt)         # (B, 3, 3)
    pred_mean = centroids[:, 0, :] + s_p * inv_n[:, None]      # true original means
    coords_mean = centroids[:, 1, :] + s_c * inv_n[:, None]
    translation = pred_mean - jnp.einsum("bij,bj->bi", rotation, coords_mean)
    rmsds_local = []
    for i, (p, c) in enumerate(zip(coords_pred, coords)):
        p32 = jnp.asarray(p, jnp.float32)
        c32 = jnp.asarray(c, jnp.float32)
        aligned = c32 @ rotation[i].T + translation[i]
        rmsds_local.append(jnp.sqrt(jnp.sum((p32 - aligned) ** 2, axis=1)))
    return rmsds_local


# ------------------------- pure-JAX reference check -------------------------- #

def _kabsch_rmsd_ref(p, c):
    """Per-structure reference mirroring the torch module (global RMSD)."""
    p = jnp.asarray(p, jnp.float32)
    c = jnp.asarray(c, jnp.float32)
    pm = p.mean(axis=0, keepdims=True)
    cm = c.mean(axis=0, keepdims=True)
    a = (p - pm).T @ (c - cm)
    u, _, vt = jnp.linalg.svd(a)
    dvec = jnp.concatenate([jnp.ones((2,), jnp.float32),
                            jnp.sign(jnp.linalg.det(a))[None]])
    rot = (u * dvec[None, :]) @ vt
    trans = pm - (rot @ cm.T).T
    aligned = (rot @ c.T).T + trans
    return jnp.sqrt(jnp.mean(jnp.sum((p - aligned) ** 2, axis=1)))


# ---------------------------------- main ------------------------------------ #

if __name__ == "__main__":
    key = jax.random.PRNGKey(0)
    ks = jax.random.split(key, 8)

    def make_pair(kc, kn, n, offset):
        c = 3.0 * jax.random.normal(kc, (n, 3), jnp.float32) + offset
        p = c + 0.1 * jax.random.normal(kn, (n, 3), jnp.float32)
        return p, c

    off0 = jnp.asarray([10.0, -5.0, 2.0], jnp.float32)
    off1 = jnp.asarray([-3.0, 7.0, 0.5], jnp.float32)
    p0, c0 = make_pair(ks[0], ks[1], 16, off0)
    p1, c1 = make_pair(ks[2], ks[3], 24, off1)
    coords_pred, coords = [p0, p1], [c0, c1]

    # 1) Default tiling: one tile per structure, grid (2, 1, 1).
    got = jax.block_until_ready(
        kabsch_rmsd(coords_pred, coords, return_all=True, mode="global"))
    want = [_kabsch_rmsd_ref(p, c) for p, c in zip(coords_pred, coords)]
    for g, w in zip(got, want):
        assert jnp.allclose(g, w, rtol=2e-3, atol=1e-3), (g, w)

    mean_rmsd = jax.block_until_ready(kabsch_rmsd(coords_pred, coords))
    assert jnp.isfinite(mean_rmsd), "mean RMSD is not finite"

    # 2) Force the multi-tile accumulation path, grid (2, 1, 6).
    p2, c2 = make_pair(ks[4], ks[5], 700, off0)
    p3, c3 = make_pair(ks[6], ks[7], 513, off1)
    got2 = jax.block_until_ready(
        kabsch_rmsd([p2, p3], [c2, c3], return_all=True, mode="global",
                    max_tile_n=128))
    want2 = [_kabsch_rmsd_ref(p2, c2), _kabsch_rmsd_ref(p3, c3)]
    for g, w in zip(got2, want2):
        assert jnp.allclose(g, w, rtol=2e-3, atol=1e-3), (g, w)

    # 3) Force the split-tile-axis (dual-TensorCore) path, grid (1, 2, 3).
    got3 = jax.block_until_ready(
        kabsch_rmsd([p2], [c2], return_all=True, mode="global",
                    max_tile_n=128, min_split_lanes=128))
    assert jnp.allclose(got3[0], want2[0], rtol=2e-3, atol=1e-3), (got3[0], want2[0])

    # 4) Local (per-point) mode smoke test.
    local = jax.block_until_ready(kabsch_rmsd(coords_pred, coords, mode="local"))
    assert all(bool(jnp.all(jnp.isfinite(r))) for r in local)

    print("KERNEL_OK")
</pallas_src>

<mosaic_0001>
module attributes {stable_mosaic.version = 11 : i64} {
  func.func @_moments_kernel(%arg0: i32, %arg1: i32, %arg2: i32, %arg3: memref<1x8x128xf32, #tpu.memory_space<vmem>>, %arg4: memref<1x1x8x128xf32, #tpu.memory_space<vmem>>, %arg5: memref<8x128xf32, #tpu.memory_space<vmem>>) attributes {dimension_semantics = [#tpu.dimension_semantics<parallel>, #tpu.dimension_semantics<parallel>, #tpu.dimension_semantics<arbitrary>], iteration_bounds = array<i64: 2, 1, 1>, scalar_prefetch = 0 : i64, scratch_operands = 1 : i64, tpu.core_type = #tpu.core_type<tc>, window_params = [{transform_indices = @transform_0, window_bounds = array<i64: 1, 8, 128>}, {transform_indices = @transform_1, window_bounds = array<i64: 1, 1, 8, 128>}]} {
    %c0_i32 = arith.constant 0 : i32
    %0 = arith.cmpi eq, %arg2, %c0_i32 : i32
    %1 = arith.extui %0 : i1 to i32
    %c0_i32_0 = arith.constant 0 : i32
    %2 = arith.cmpi ne, %1, %c0_i32_0 : i32
    scf.if %2 {
      %cst_14 = arith.constant 0.000000e+00 : f32
      %66 = vector.broadcast %cst_14 : f32 to vector<8x128xf32>
      %c0_15 = arith.constant 0 : index
      %c0_16 = arith.constant 0 : index
      %67 = vector.load %arg5[%c0_15, %c0_16] : memref<8x128xf32, #tpu.memory_space<vmem>>, vector<8x128xf32>
      tpu.vector_store %arg5[%c0_15, %c0_16], %66 {strides = array<i32>} : memref<8x128xf32, #tpu.memory_space<vmem>>, vector<8x128xf32>,
    } else {
    }
    %c0 = arith.constant 0 : index
    %c0_1 = arith.constant 0 : index
    %c0_2 = arith.constant 0 : index
    %3 = vector.load %arg3[%c0, %c0_1, %c0_2] : memref<1x8x128xf32, #tpu.memory_space<vmem>>, vector<1x8x128xf32>
    %4 = vector.shape_cast %3 : vector<1x8x128xf32> to vector<8x128xf32>
    %5 = vector.extract_strided_slice %4 {offsets = [3, 0], sizes = [1, 128], strides = [1, 1]} : vector<8x128xf32> to vector<1x128xf32>
    %6 = vector.extract_strided_slice %4 {offsets = [4, 0], sizes = [1, 128], strides = [1, 1]} : vector<8x128xf32> to vector<1x128xf32>
    %7 = vector.extract_strided_slice %4 {offsets = [5, 0], sizes = [1, 128], strides = [1, 1]} : vector<8x128xf32> to vector<1x128xf32>
    %cst = arith.constant dense<0.000000e+00> : vector<8xf32>
    %8 = vector.multi_reduction <add>, %4, %cst [1] : vector<8x128xf32> to vector<8xf32>
    %9 = vector.shape_cast %8 : vector<8xf32> to vector<8x1xf32>
    %10 = arith.mulf %4, %4 : vector<8x128xf32>
    %cst_3 = arith.constant dense<0.000000e+00> : vector<8xf32>
    %11 = vector.multi_reduction <add>, %10, %cst_3 [1] : vector<8x128xf32> to vector<8xf32>
    %12 = vector.shape_cast %11 : vector<8xf32> to vector<8x1xf32>
    %13 = vector.broadcast %5 : vector<1x128xf32> to vector<8x128xf32>
    %14 = arith.mulf %4, %13 : vector<8x128xf32>
    %cst_4 = arith.constant dense<0.000000e+00> : vector<8xf32>
    %15 = vector.multi_reduction <add>, %14, %cst_4 [1] : vector<8x128xf32> to vector<8xf32>
    %16 = vector.shape_cast %15 : vector<8xf32> to vector<8x1xf32>
    %17 = vector.broadcast %6 : vector<1x128xf32> to vector<8x128xf32>
    %18 = arith.mulf %4, %17 : vector<8x128xf32>
    %cst_5 = arith.constant dense<0.000000e+00> : vector<8xf32>
    %19 = vector.multi_reduction <add>, %18, %cst_5 [1] : vector<8x128xf32> to vector<8xf32>
    %20 = vector.shape_cast %19 : vector<8xf32> to vector<8x1xf32>
    %21 = vector.broadcast %7 : vector<1x128xf32> to vector<8x128xf32>
    %22 = arith.mulf %4, %21 : vector<8x128xf32>
    %cst_6 = arith.constant dense<0.000000e+00> : vector<8xf32>
    %23 = vector.multi_reduction <add>, %22, %cst_6 [1] : vector<8x128xf32> to vector<8xf32>
    %24 = vector.shape_cast %23 : vector<8xf32> to vector<8x1xf32>
    %25 = tpu.iota {dimensions = array<i32: 1>} : vector<8x128xi32>
    %c0_i32_7 = arith.constant 0 : i32
    %26 = vector.broadcast %c0_i32_7 : i32 to vector<8x128xi32>
    %27 = arith.cmpi eq, %25, %26 : vector<8x128xi32>
    %28 = arith.extui %27 : vector<8x128xi1> to vector<8x128xi32>
    %29 = arith.sitofp %28 : vector<8x128xi32> to vector<8x128xf32>
    %30 = vector.broadcast %9 : vector<8x1xf32> to vector<8x128xf32>
    %31 = arith.mulf %30, %29 : vector<8x128xf32>
    %c1_i32 = arith.constant 1 : i32
    %32 = vector.broadcast %c1_i32 : i32 to vector<8x128xi32>
    %33 = arith.cmpi eq, %25, %32 : vector<8x128xi32>
    %34 = arith.extui %33 : vector<8x128xi1> to vector<8x128xi32>
    %35 = arith.sitofp %34 : vector<8x128xi32> to vector<8x128xf32>
    %36 = vector.broadcast %12 : vector<8x1xf32> to vector<8x128xf32>
    %37 = arith.mulf %36, %35 : vector<8x128xf32>
    %38 = arith.addf %31, %37 : vector<8x128xf32>
    %c2_i32 = arith.constant 2 : i32
    %39 = vector.broadcast %c2_i32 : i32 to vector<8x128xi32>
    %40 = arith.cmpi eq, %25, %39 : vector<8x128xi32>
    %41 = arith.extui %40 : vector<8x128xi1> to vector<8x128xi32>
    %42 = arith.sitofp %41 : vector<8x128xi32> to vector<8x128xf32>
    %43 = vector.broadcast %16 : vector<8x1xf32> to vector<8x128xf32>
    %44 = arith.mulf %43, %42 : vector<8x128xf32>
    %45 = arith.addf %38, %44 : vector<8x128xf32>
    %c3_i32 = arith.constant 3 : i32
    %46 = vector.broadcast %c3_i32 : i32 to vector<8x128xi32>
    %47 = arith.cmpi eq, %25, %46 : vector<8x128xi32>
    %48 = arith.extui %47 : vector<8x128xi1> to vector<8x128xi32>
    %49 = arith.sitofp %48 : vector<8x128xi32> to vector<8x128xf32>
    %50 = vector.broadcast %20 : vector<8x1xf32> to vector<8x128xf32>
    %51 = arith.mulf %50, %49 : vector<8x128xf32>
    %52 = arith.addf %45, %51 : vector<8x128xf32>
    %c4_i32 = arith.constant 4 : i32
    %53 = vector.broadcast %c4_i32 : i32 to vector<8x128xi32>
    %54 = arith.cmpi eq, %25, %53 : vector<8x128xi32>
    %55 = arith.extui %54 : vector<8x128xi1> to vector<8x128xi32>
    %56 = arith.sitofp %55 : vector<8x128xi32> to vector<8x128xf32>
    %57 = vector.broadcast %24 : vector<8x1xf32> to vector<8x128xf32>
    %58 = arith.mulf %57, %56 : vector<8x128xf32>
    %59 = arith.addf %52, %58 : vector<8x128xf32>
    %c0_8 = arith.constant 0 : index
    %c0_9 = arith.constant 0 : index
    %60 = vector.load %arg5[%c0_8, %c0_9] : memref<8x128xf32, #tpu.memory_space<vmem>>, vector<8x128xf32>
    %61 = arith.addf %60, %59 : vector<8x128xf32>
    %c0_10 = arith.constant 0 : index
    %c0_11 = arith.constant 0 : index
    %62 = vector.load %arg5[%c0_10, %c0_11] : memref<8x128xf32, #tpu.memory_space<vmem>>, vector<8x128xf32>
    tpu.vector_store %arg5[%c0_10, %c0_11], %61 {strides = array<i32>} : memref<8x128xf32, #tpu.memory_space<vmem>>, vector<8x128xf32>,
    %c0_i32_12 = arith.constant 0 : i32
    %63 = arith.cmpi eq, %arg2, %c0_i32_12 : i32
    %64 = arith.extui %63 : i1 to i32
    %c0_i32_13 = arith.constant 0 : i32
    %65 = arith.cmpi ne, %64, %c0_i32_13 : i32
    scf.if %65 {
      %c0_14 = arith.constant 0 : index
      %c0_15 = arith.constant 0 : index
      %66 = vector.load %arg5[%c0_14, %c0_15] : memref<8x128xf32, #tpu.memory_space<vmem>>, vector<8x128xf32>
      %c0_16 = arith.constant 0 : index
      %c0_17 = arith.constant 0 : index
      %c0_18 = arith.constant 0 : index
      %c0_19 = arith.constant 0 : index
      %67 = vector.load %arg4[%c0_16, %c0_17, %c0_18, %c0_19] : memref<1x1x8x128xf32, #tpu.memory_space<vmem>>, vector<1x1x8x128xf32>
      %68 = vector.shape_cast %67 : vector<1x1x8x128xf32> to vector<8x128xf32>
      %69 = vector.shape_cast %66 : vector<8x128xf32> to vector<1x1x8x128xf32>
      tpu.vector_store %arg4[%c0_16, %c0_17, %c0_18, %c0_19], %69 {strides = array<i32>} : memref<1x1x8x128xf32, #tpu.memory_space<vmem>>, vector<1x1x8x128xf32>,
    } else {
    }
    return
  }
  func.func @transform_0(%arg0: i32, %arg1: i32, %arg2: i32) -> (i32, i32, i32) {
    %c1_i32 = arith.constant 1 : i32
    %0 = arith.muli %arg1, %c1_i32 : i32
    %1 = arith.addi %0, %arg2 : i32
    %c0_i32 = arith.constant 0 : i32
    %c0_i32_0 = arith.constant 0 : i32
    return %arg0, %c0_i32, %1 : i32, i32, i32
  }
  func.func @transform_1(%arg0: i32, %arg1: i32, %arg2: i32) -> (i32, i32, i32, i32) {
    %c0_i32 = arith.constant 0 : i32
    %c0_i32_0 = arith.constant 0 : i32
    %c0_i32_1 = arith.constant 0 : i32
    return %arg0, %arg1, %c0_i32, %c0_i32_0 : i32, i32, i32, i32
  }
}

</mosaic_0001>

<llo_original>
// kernel: tpu_custom_call.1
$region0: #{tpu_custom_call.1}
  #allocation0 [shape = 'u32[]', space=smem, size = 0x4, offset = 0x4, fixed_abs, tag = 'smem constant byte address 0x4 - core index']
  #allocation1 [shape = 'u32[144,128]{1,0:T(1,128)}', space=vmem, size = 0x12000, scoped, tag = 'internal scratch']
  #allocation2 [shape = 'f32[8,128]{1,0:T(8,128)}', space=vmem, size = 0x1000, scoped, tag = 'scratch operand']
  %s0 = inlined_call_operand.hbm [shape: f32[2,8,128], index: 0, kind: input, shape index: {}]
  %s1 = inlined_call_operand.hbm [shape: f32[2,1,8,128], index: 1, kind: output, shape index: {}]
  %s2 = sld [smem:[#allocation0]]
  $region49: #{tpu_custom_call.1} parent=0
    _
  %s4 = ssub.s32 1, %s2
  %s5 = scalar_select 0, %s4, %s2
  $region1: #{tpu_custom_call.1} parent=0
    #allocation3 [shape = 'u8[8192]{0}', space=vmem, size = 0x2000, scoped, tag = 'input window, operand 0']
    #allocation4 [shape = 's32[2]{0}', space=sflag, size = 0x8, scoped, tag = 'scoped memory for tpu_custom_call.1']
    #allocation5 [shape = 's32[2]{0}', space=sflag, size = 0x8, scoped, tag = 'scoped memory for tpu_custom_call.1']
    #allocation6 [shape = 'u8[8192]{0}', space=vmem, size = 0x2000, scoped, tag = 'output window, operand 0']
    %6 = vsyncpa [#allocation4], 0
    %s7 = scalar_lea.sflag [#allocation4], 1
    %8 = vsyncpa %s7, 0
    %9 = vsyncpa [#allocation5], 0
    %s10 = scalar_lea.sflag [#allocation5], 1
    %11 = vsyncpa %s10, 0
    loop: start=0, step=1, limit=4
    $region2: #{tpu_custom_call.1} parent=1 // loop_pre_header
      _
    $region3: #{tpu_custom_call.1} parent=1 // loop_header
      %s13 = sphi 0, %s17
      %p14 = scmp.ge.s32.totalorder %s13, 4
      %s20 = sphi 0, %s39
      %s21 = sphi 0, %s35
      %s22 = sphi 0, %s31
      %s23 = sphi 0, %s20
      %s24 = sphi 0, %s21
      %s25 = sphi 0, %s22
      %s26 = sphi 0, %s23
      %s27 = sphi 0, %s24
      %s28 = sphi 0, %s25
      %s46 = sphi 0, %s48
      %s49 = sphi 0, %s46
      %s50 = sphi 0, %s49
      %s66 = sphi 0, %s50
      %s74 = sphi 0, %s76
      %s77 = sphi 0, %s74
      %s78 = sphi 0, %s77
      %s94 = sphi 0, %s78
    $region4: #{tpu_custom_call.1} parent=1 // loop_header_branch
      %16 = sbr.rel (%p14) target = $region8
    $region5: #{tpu_custom_call.1} parent=1 // loop_body
      %s18 = ssub.s32 %s13, 1
      %s19 = ssub.s32 %s13, 2
      %s29 = sadd.s32 1, %s22
      %p30 = scmp.ge.s32.totalorder %s29, 1
      %s31 = scalar_select %p30, 0, %s29
      %s32 = sadd.s32 1, %s21
      %s33 = scalar_select %p30, %s32, %s21
      %p34 = scmp.ge.s32.totalorder %s33, 1
      %s35 = scalar_select %p34, 0, %s33
      %s36 = sadd.s32 1, %s20
      %s37 = scalar_select %p34, %s36, %s20
      %p38 = scmp.ge.s32.totalorder %s37, 2
      %s39 = scalar_select %p38, 0, %s37
      %s40 = sadd.s32 %s21, %s22
      %s41 = sadd.s32 %s35, %s31
      %s42 = ssub.s32 %s20, %s39
      %s43 = ssub.s32 %s40, %s41
      %s44 = sor.u32 %s42, %s43
      %p45 = scmp.eq.s32.totalorder %s44, 0
      %s47 = sadd.s32 %s46, 1
      %s48 = scalar_select %p45, %s46, %s47
      %p51 = pneg %p45
      %p52 = scmp.eq.s32.totalorder %s13, 1
      %p53 = por %p51, %p52
      %p54 = scmp.ne.s32.totalorder %s46, %s49
      %p55 = scmp.eq.s32.totalorder %s13, 0
      %p56 = por %p54, %p55
      %p57 = scmp.ne.s32.totalorder %s46, %s49
      %p58 = scmp.eq.s32.totalorder %s18, 1
      %p59 = por %p57, %p58
      %p60 = scmp.ne.s32.totalorder %s49, %s50
      %p61 = scmp.eq.s32.totalorder %s18, 0
      %p62 = por %p60, %p61
      %p63 = scmp.ne.s32.totalorder %s49, %s50
      %p64 = scmp.eq.s32.totalorder %s19, 1
      %p65 = por %p63, %p64
      %p67 = scmp.ne.s32.totalorder %s50, %s66
      %p68 = scmp.eq.s32.totalorder %s19, 0
      %p69 = por %p67, %p68
      %s70 = ssub.s32 %s20, %s39
      %s71 = ssub.s32 %s21, %s35
      %s72 = sor.u32 %s70, %s71
      %p73 = scmp.eq.s32.totalorder %s72, 0
      %s75 = sadd.s32 %s74, 1
      %s76 = scalar_select %p73, %s74, %s75
      %p79 = pneg %p73
      %p80 = scmp.eq.s32.totalorder %s13, 1
      %p81 = por %p79, %p80
      %p82 = scmp.ne.s32.totalorder %s74, %s77
      %p83 = scmp.eq.s32.totalorder %s13, 0
      %p84 = por %p82, %p83
      %p85 = scmp.ne.s32.totalorder %s74, %s77
      %p86 = scmp.eq.s32.totalorder %s18, 1
      %p87 = por %p85, %p86
      %p88 = scmp.ne.s32.totalorder %s77, %s78
      %p89 = scmp.eq.s32.totalorder %s18, 0
      %p90 = por %p88, %p89
      %p91 = scmp.ne.s32.totalorder %s77, %s78
      %p92 = scmp.eq.s32.totalorder %s19, 1
      %p93 = por %p91, %p92
      %p95 = scmp.ne.s32.totalorder %s78, %s94
      %p96 = scmp.eq.s32.totalorder %s19, 0
      %p97 = por %p95, %p96
      %p98 = scmp.le.s32.totalorder 1, %s13
      %p99 = scmp.lt.s32.totalorder %s13, 3
      %p100 = pnand %p98, %p99
      %p101 = pneg %p100
      // Predicated region
      $region9: #{tpu_custom_call.1} parent=5 // pred_check
        _
      $region10: #{tpu_custom_call.1} parent=5 // pred_check_branch
        %103 = sbr.rel (%p100) target = $region12
      $region11: #{tpu_custom_call.1} parent=5 // pred_region
        %s104 = ssub.s32 %s13, 1
      $region12: #{tpu_custom_call.1} parent=5 // pred_fallthru
        _
      %p105 = scmp.lt.s32.totalorder %s13, 2
      // Predicated region
      $region13: #{tpu_custom_call.1} parent=5 // pred_check
        %p106 = pneg %p105
      $region14: #{tpu_custom_call.1} parent=5 // pred_check_branch
        %108 = sbr.rel (%p106) target = $region16
      $region15: #{tpu_custom_call.1} parent=5 // pred_region
        // Predicated region
        $region17: #{tpu_custom_call.1} parent=15 // pred_check
          %p109 = pneg %p56
        $region18: #{tpu_custom_call.1} parent=15 // pred_check_branch
          %111 = sbr.rel (%p109) target = $region20
        $region19: #{tpu_custom_call.1} parent=15 // pred_region
          %s112 = sand.u32 %s46, 1
          %s113 = scalar_lea.sflag [#allocation4], %s112
          %s114 = sand.u32 %s46, 1
          %s115 = smul.addr %s114, 8
          %s116 = scalar_lea.vmem [#allocation3], %s115
          %s117 = sadd.s32 %s21, %s22
          %s119 = ssub.s32 128, 128
          %120 = vsyncadd %s113, %s119
          %s121 = sadd.s32 %s117, %s20
          %s122 = smul.addr %s121, 128
          %s123 = scalar_lea.hbm %s0, %s122
          %s125 = sshll.u32 %s116, 4
          %s126 = int_to_ptr.vmem [resolvable:$true] %s125
          %128 = dma.hbm_to_vmem [thread:$0]  %s123, 128, %s126, %s113
        $region20: #{tpu_custom_call.1} parent=15 // pred_fallthru
          _
      $region16: #{tpu_custom_call.1} parent=5 // pred_fallthru
        _
      %p129 = scmp.le.s32.totalorder 1, %s13
      %p130 = scmp.lt.s32.totalorder %s13, 3
      %p131 = pnand %p129, %p130
      %p132 = pneg %p131
      // Predicated region
      $region21: #{tpu_custom_call.1} parent=5 // pred_check
        _
      $region22: #{tpu_custom_call.1} parent=5 // pred_check_branch
        %134 = sbr.rel (%p131) target = $region24
      $region23: #{tpu_custom_call.1} parent=5 // pred_region
        %s135 = ssub.s32 %s13, 1
        %s136 = sand.u32 %s49, 1
        %s137 = scalar_lea.sflag [#allocation4], %s136
        %s138 = sand.u32 %s49, 1
        %s139 = smul.addr %s138, 8
        %s140 = scalar_lea.vmem [#allocation3], %s139
        // Predicated region
        $region25: #{tpu_custom_call.1} parent=23 // pred_check
          %p141 = pneg %p62
        $region26: #{tpu_custom_call.1} parent=23 // pred_check_branch
          %143 = sbr.rel (%p141) target = $region28
        $region27: #{tpu_custom_call.1} parent=23 // pred_region
          %144 = dma.done %s137, 128
        $region28: #{tpu_custom_call.1} parent=23 // pred_fallthru
          _
        %s145 = sand.u32 %s49, 1
        %s146 = scalar_lea.sflag [#allocation4], %s145
        %s147 = sand.u32 %s49, 1
        %s148 = smul.addr %s147, 8
        %s149 = scalar_lea.vmem [#allocation3], %s148
        %p150 = pneg %p62
        %p151 = pneg %p59
        %p152 = pneg %p90
        %p153 = pneg %p87
        %s154 = sand.u32 %s77, 1
        %s155 = scalar_lea.sflag [#allocation5], %s154
        %s156 = sand.u32 %s77, 1
        %s157 = smul.addr %s156, 8
        %s158 = scalar_lea.vmem [#allocation6], %s157
        %s159 = sadd.s32 %s24, %s25
        %p160 = scmp.eq.s32.totalorder %s25, 0
        // Predicated region
        $region29: #{tpu_custom_call.1} parent=23 // pred_check
          %p161 = pneg %p160
        $region30: #{tpu_custom_call.1} parent=23 // pred_check_branch
          %163 = sbr.rel (%p161) target = $region32
        $region31: #{tpu_custom_call.1} parent=23 // pred_region
          %164 = vst [vmem:[#allocation2] sm:$0xff] 0.0
        $region32: #{tpu_custom_call.1} parent=23 // pred_fallthru
          _
        %v165 = vld [vmem:[%s140] sm:$0xff]
        %166 = vadd.xlane.f32.xlu0 %v165
        %v167 = vpop.xlane.xlu0 %166
        %v168 = vmul.f32 %v165, %v165
        %169 = vadd.xlane.f32.xlu0 %v168
        %v170 = vpop.xlane.xlu0 %169
        %v171 = vlaneseq
        %v172 = vshrl.u32 %v171, 7
        %v173 = vsub.s32 3, %v172
        %v174 = vrot.slane %v165, %v173
        %v175 = vmul.f32 %v165, %v174
        %176 = vadd.xlane.f32.xlu0 %v175
        %v177 = vpop.xlane.xlu0 %176
        %v178 = vlaneseq
        %v179 = vshrl.u32 %v178, 7
        %v180 = vsub.s32 4, %v179
        %v181 = vrot.slane %v165, %v180
        %v182 = vmul.f32 %v165, %v181
        %183 = vadd.xlane.f32.xlu0 %v182
        %v184 = vpop.xlane.xlu0 %183
        %v185 = vlaneseq
        %v186 = vshrl.u32 %v185, 7
        %v187 = vsub.s32 5, %v186
        %v188 = vrot.slane %v165, %v187
        %v189 = vmul.f32 %v165, %v188
        %190 = vadd.xlane.f32.xlu0 %v189
        %v191 = vpop.xlane.xlu0 %190
        %v192 = vlaneseq
        %v193 = vand.u32 %v192, 127
        %vm194 = vcmp.eq.s32.totalorder %v193, 0
        %v195 = vsel %vm194, 1, 0
        %v196 = vcvt.s32.f32 %v195
        %v197 = vmul.f32 %v167, %v196
        %vm198 = vcmp.eq.s32.totalorder %v193, 1
        %v199 = vsel %vm198, 1, 0
        %v200 = vcvt.s32.f32 %v199
        %v201 = vmul.f32 %v170, %v200
        %v202 = vadd.f32 %v197, %v201
        %vm203 = vcmp.eq.s32.totalorder %v193, 2
        %v204 = vsel %vm203, 1, 0
        %v205 = vcvt.s32.f32 %v204
        %v206 = vmul.f32 %v177, %v205
        %v207 = vadd.f32 %v202, %v206
        %vm208 = vcmp.eq.s32.totalorder %v193, 3
        %v209 = vsel %vm208, 1, 0
        %v210 = vcvt.s32.f32 %v209
        %v211 = vmul.f32 %v184, %v210
        %v212 = vadd.f32 %v207, %v211
        %vm213 = vcmp.eq.s32.totalorder %v193, 4
        %v214 = vsel %vm213, 1, 0
        %v215 = vcvt.s32.f32 %v214
        %v216 = vmul.f32 %v191, %v215
        %v217 = vadd.f32 %v212, %v216
        %v218 = vld [vmem:[#allocation2] sm:$0xff]
        %v219 = vadd.f32 %v218, %v217
        %220 = vst [vmem:[#allocation2] sm:$0xff] %v219
        // Predicated region
        $region33: #{tpu_custom_call.1} parent=23 // pred_check
          %p221 = pneg %p160
        $region34: #{tpu_custom_call.1} parent=23 // pred_check_branch
          %223 = sbr.rel (%p221) target = $region36
        $region35: #{tpu_custom_call.1} parent=23 // pred_region
          %v224 = vld [vmem:[#allocation2] sm:$0xff]
          %225 = vst [vmem:[%s158] sm:$0xff] %v224
        $region36: #{tpu_custom_call.1} parent=23 // pred_fallthru
          _
        %s226 = sand.u32 %s77, 1
        %s227 = scalar_lea.sflag [#allocation5], %s226
        %s228 = sand.u32 %s77, 1
        %s229 = smul.addr %s228, 8
        %s230 = scalar_lea.vmem [#allocation6], %s229
        // Predicated region
        $region37: #{tpu_custom_call.1} parent=23 // pred_check
          %p231 = pneg %p87
        $region38: #{tpu_custom_call.1} parent=23 // pred_check_branch
          %233 = sbr.rel (%p231) target = $region40
        $region39: #{tpu_custom_call.1} parent=23 // pred_region
          %s235 = ssub.s32 128, 128
          %236 = vsyncadd %s227, %s235
          %s237 = sadd.s32 %s24, %s23
          %s238 = smul.addr %s237, 128
          %s239 = scalar_lea.hbm %s1, %s238
          %s241 = sshll.u32 %s230, 4
          %s242 = int_to_ptr.vmem [resolvable:$true] %s241
          %244 = dma.vmem_to_hbm [thread:$0]  %s242, 128, %s239, %s227
        $region40: #{tpu_custom_call.1} parent=23 // pred_fallthru
          _
      $region24: #{tpu_custom_call.1} parent=5 // pred_fallthru
        _
      %p245 = scmp.le.s32.totalorder 2, %s13
      // Predicated region
      $region41: #{tpu_custom_call.1} parent=5 // pred_check
        %p246 = pneg %p245
      $region42: #{tpu_custom_call.1} parent=5 // pred_check_branch
        %248 = sbr.rel (%p246) target = $region44
      $region43: #{tpu_custom_call.1} parent=5 // pred_region
        %s249 = ssub.s32 %s13, 2
        // Predicated region
        $region45: #{tpu_custom_call.1} parent=43 // pred_check
          %p250 = pneg %p93
        $region46: #{tpu_custom_call.1} parent=43 // pred_check_branch
          %252 = sbr.rel (%p250) target = $region48
        $region47: #{tpu_custom_call.1} parent=43 // pred_region
          %s253 = sand.u32 %s78, 1
          %s254 = scalar_lea.sflag [#allocation5], %s253
          %s255 = sand.u32 %s78, 1
          %s256 = smul.addr %s255, 8
          %s257 = scalar_lea.vmem [#allocation6], %s256
          %258 = dma.done %s254, 128
        $region48: #{tpu_custom_call.1} parent=43 // pred_fallthru
          _
      $region44: #{tpu_custom_call.1} parent=5 // pred_fallthru
        _
    $region6: #{tpu_custom_call.1} parent=1 // loop_footer
      %s17 = sadd.s32 1, %s13
    $region7: #{tpu_custom_call.1} parent=1 // loop_footer_branch
      %12 = sbr.rel target = $region3
    $region8: #{tpu_custom_call.1} parent=1 // loop_exit
      _
    %259 = vsyncpa [#allocation4], 1
    %s260 = scalar_lea.sflag [#allocation4], 1
    %261 = vsyncpa %s260, 1
    %262 = vsyncpa [#allocation5], 1
    %s263 = scalar_lea.sflag [#allocation5], 1
    %264 = vsyncpa %s263, 1

</llo_original>
